<compile_context>
chip_gen: v7x
topology: tpu7x:2x2x1
jax: 0.10.0
libtpu: 0.0.40
codegen_flags: <defaults>
</compile_context>

<pallas_src>
import jax
import jax.numpy as jnp
from jax.experimental import pallas as pl
from jax.experimental.pallas import tpu as pltpu


def _make_kernel(TB, L, D):
    """Kernel for one batch tile: TB batch elements, time-major (L*TB, D) rows."""
    inv_L = 1.0 / L

    def kernel(x_ref, wf_ref, bf_ref, dA_ref, small_ref,
               w1_ref, b1_ref, w2_ref, out_ref):
        eps = 1e-5

        x = x_ref[...]                                   # (L*TB, D), row = t*TB + b
        small = small_ref[...]                           # (6, D) packed vectors
        ln1_g, ln1_b = small[0:1, :], small[1:2, :]
        st_bias = small[2:3, :]
        ln2_g, ln2_b = small[3:4, :], small[4:5, :]
        b2 = small[5:6, :]

        # ---- LayerNorm (pre S6_noC); var = E[x^2] - mu^2 (independent reductions)
        mu = jnp.mean(x, axis=-1, keepdims=True)
        ex2 = jnp.mean(x * x, axis=-1, keepdims=True)
        var = ex2 - mu * mu
        xn = (x - mu) * jax.lax.rsqrt(var + eps) * ln1_g + ln1_b
        z = jax.nn.sigmoid(xn)

        # ---- fused projection: [ LN_B | LN_C | LN_delta | SToken.fc ] (one MXU matmul)
        proj = jnp.dot(xn, wf_ref[...],
                       preferred_element_type=jnp.float32) + bf_ref[...]   # (L*TB, 4D)
        B0 = proj[:, 0:D]
        C_ = proj[:, D:2 * D]
        dproj = proj[:, 2 * D:3 * D]
        stproj = proj[:, 3 * D:4 * D]

        dA = dA_ref[...]                                 # (2L, D): delta rows, then A rows

        # ---- selective scan vectorized over the batch tile, fused with the L-pool.
        # SToken gate is factored out: only acc_cs / acc_xz are in the loop.
        # Static Python unroll is fine only because L <= 8 (else fori_loop(unroll=True)).
        s = jnp.zeros((TB, D), jnp.float32)
        acc_cs = jnp.zeros((TB, D), jnp.float32)         # sum_t (C_t * s_t) * z_t
        acc_xz = jnp.zeros((TB, D), jnp.float32)         # sum_t xn_t * z_t
        acc_x = jnp.zeros((TB, D), jnp.float32)          # sum_t x_t       (residual pool)
        acc_st = jnp.zeros((TB, D), jnp.float32)         # sum_t SToken.fc(xn_t)
        for t in range(L):
            lo = t * TB
            xt = xn[lo:lo + TB, :]
            zt = z[lo:lo + TB, :]
            dt = jax.nn.sigmoid(dproj[lo:lo + TB, :] + dA[t:t + 1, :])
            a_t = dt * dA[L + t:L + t + 1, :]
            b_t = dt * B0[lo:lo + TB, :]
            s = a_t * s + b_t * xt
            acc_cs = acc_cs + (C_[lo:lo + TB, :] * s) * zt
            acc_xz = acc_xz + xt * zt
            acc_x = acc_x + x[lo:lo + TB, :]
            acc_st = acc_st + stproj[lo:lo + TB, :]

        # SToken gate: sigmoid(relu(mean_t(xn) @ st_w + st_b)) + st_bias   (time-invariant)
        gate = jax.nn.sigmoid(jax.nn.relu(acc_st * inv_L)) + st_bias        # (TB, D)

        # pooled = mean_t( (C_t*s_t)*z_t + gate*xn_t*z_t + x_t )
        p = (acc_x + acc_cs + gate * acc_xz) * inv_L                         # (TB, D)

        # ---- LayerNorm (pre MLP) ----
        mu2 = jnp.mean(p, axis=-1, keepdims=True)
        ex2b = jnp.mean(p * p, axis=-1, keepdims=True)
        var2 = ex2b - mu2 * mu2
        pn = (p - mu2) * jax.lax.rsqrt(var2 + eps) * ln2_g + ln2_b

        # ---- MLP: Linear -> GELU(tanh form, EUP) -> Linear (dropout = id) ----
        h = jnp.dot(pn, w1_ref[...], preferred_element_type=jnp.float32) + b1_ref[...]
        h = 0.5 * h * (1.0 + jnp.tanh(0.7978845608028654 * (h + 0.044715 * h * h * h)))
        o = jnp.dot(h, w2_ref[...], preferred_element_type=jnp.float32) + b2

        out_ref[...] = o + p                                                 # residual 2

    return kernel


def stmamba_block(x, params, *, batch_tile=None):
    B, L, D = x.shape
    H = params["w1"].shape[1]

    # Batch tile.  Default is the full batch (single grid step).  For large B
    # (e.g. v7x megacore), choose TB % 8 == 0 with n_tiles a multiple of 2 so
    # dimension_semantics=("parallel",) can shard across both TensorCores;
    # size TB against v7x's 64 MiB VMEM (not v5e/v6e's 128 MiB).
    TB = B if batch_tile is None else batch_tile
    assert B % TB == 0, "batch_tile must divide batch"
    assert TB == B or TB % 8 == 0, \
        "batch tile must be the full batch or a multiple of 8 (sublane tiling)"
    n_tiles = B // TB
    rows = TB * L

    # ---- host-side parameter packing (pure layout plumbing) ----
    w_fused = jnp.concatenate(
        [params["wB"], params["wC"], params["wD"], params["st_w"]], axis=1)   # (D, 4D)
    b_fused = jnp.concatenate(
        [params["bB"], params["bC"], params["bD"], params["st_b"]], axis=1)   # (1, 4D)
    dA = jnp.concatenate([params["delta"], params["A"]], axis=0)              # (2L, D) untiled
    small = jnp.concatenate(
        [params["ln1_g"], params["ln1_b"], params["st_bias"],
         params["ln2_g"], params["ln2_b"], params["b2"]], axis=0)             # (6, D)

    # ---- time-major layout: (B,L,D) -> (n_tiles, L*TB, D), rows t-major per tile
    x_tm = jnp.transpose(x, (1, 0, 2)).reshape(L, n_tiles, TB, D)
    x_tm = jnp.transpose(x_tm, (1, 0, 2, 3)).reshape(n_tiles, rows, D)

    kernel = _make_kernel(TB, L, D)

    in_specs = [
        pl.BlockSpec((None, rows, D), lambda i: (i, 0, 0)),   # x rows for this batch tile
        pl.BlockSpec((D, 4 * D), lambda i: (0, 0)),           # fused projection weights
        pl.BlockSpec((1, 4 * D), lambda i: (0, 0)),           # fused projection bias
        pl.BlockSpec((2 * L, D), lambda i: (0, 0)),           # delta / A (untiled)
        pl.BlockSpec((6, D), lambda i: (0, 0)),               # packed (1, D) vectors
        pl.BlockSpec((D, H), lambda i: (0, 0)),               # MLP w1
        pl.BlockSpec((1, H), lambda i: (0, 0)),               # MLP b1
        pl.BlockSpec((H, D), lambda i: (0, 0)),               # MLP w2
    ]

    out = pl.pallas_call(
        kernel,
        out_shape=jax.ShapeDtypeStruct((B, D), jnp.float32),
        grid=(n_tiles,),
        in_specs=in_specs,
        out_specs=pl.BlockSpec((TB, D), lambda i: (i, 0)),
        compiler_params=pltpu.CompilerParams(dimension_semantics=("parallel",)),
    )(x_tm, w_fused, b_fused, dA, small,
      params["w1"], params["b1"], params["w2"])
    return out                                                # (B, D), matches .squeeze()


def stmamba_ref(x, p):
    # Pure-JAX reference mirroring the PyTorch forward (exact erf GELU).
    eps = 1e-5

    def ln(v, g, b):
        mu = jnp.mean(v, axis=-1, keepdims=True)
        var = jnp.mean((v - mu) ** 2, axis=-1, keepdims=True)
        return (v - mu) / jnp.sqrt(var + eps) * g + b

    xn = ln(x, p["ln1_g"], p["ln1_b"])
    z = jax.nn.sigmoid(xn)
    B0 = xn @ p["wB"] + p["bB"]
    C_ = xn @ p["wC"] + p["bC"]
    sq = jnp.mean(xn, axis=1, keepdims=True)
    sq = jax.nn.sigmoid(jax.nn.relu(sq @ p["st_w"] + p["st_b"]))
    T_ = (sq + p["st_bias"]) * xn
    delta = jax.nn.sigmoid(xn @ p["wD"] + p["bD"] + p["delta"][None])
    A_ = delta * p["A"][None]
    B_ = delta * B0
    s = jnp.zeros((x.shape[0], x.shape[2]), jnp.float32)
    ys = []
    for t in range(x.shape[1]):
        s = A_[:, t] * s + B_[:, t] * xn[:, t]
        ys.append(C_[:, t] * s + T_[:, t])
    y = jnp.stack(ys, axis=1)
    x_res = y * z + x
    pooled = jnp.mean(x_res, axis=1)
    pn = ln(pooled, p["ln2_g"], p["ln2_b"])
    h = pn @ p["w1"] + p["b1"]
    h = 0.5 * h * (1.0 + jax.lax.erf(h * 0.7071067811865476))
    return h @ p["w2"] + p["b2"] + pooled


def make_params(key, L, D, H):
    ks = jax.random.split(key, 16)

    def rnd(k, shape, scale=0.2):
        return (scale * jax.random.normal(k, shape)).astype(jnp.float32)

    return dict(
        ln1_g=jnp.ones((1, D), jnp.float32), ln1_b=jnp.zeros((1, D), jnp.float32),
        wB=rnd(ks[0], (D, D)), bB=rnd(ks[1], (1, D)),
        wC=rnd(ks[2], (D, D)), bC=rnd(ks[3], (1, D)),
        wD=rnd(ks[4], (D, D)), bD=rnd(ks[5], (1, D)),
        delta=rnd(ks[6], (L, D)), A=rnd(ks[7], (L, D)),
        st_w=rnd(ks[8], (D, D)), st_b=rnd(ks[9], (1, D)), st_bias=rnd(ks[10], (1, D)),
        ln2_g=jnp.ones((1, D), jnp.float32), ln2_b=jnp.zeros((1, D), jnp.float32),
        w1=rnd(ks[11], (D, H)), b1=rnd(ks[12], (1, H)),
        w2=rnd(ks[13], (H, D)), b2=rnd(ks[14], (1, D)),
    )


if __name__ == "__main__":
    B, L, D, H = 2, 8, 32, 64          # batch, seq_len, dim, mlp_dim (depth = 1)
    key = jax.random.PRNGKey(0)
    kx, kp = jax.random.split(key)
    x = jax.random.normal(kx, (B, L, D), dtype=jnp.float32)
    params = make_params(kp, L, D, H)

    out = jax.block_until_ready(stmamba_block(x, params))
    ref = stmamba_ref(x, params)

    assert out.shape == (B, D), out.shape
    # Tolerance allows for the tanh-form GELU (vs exact erf in the reference).
    assert jnp.allclose(out, ref, atol=2e-3, rtol=2e-3), (
        float(jnp.max(jnp.abs(out - ref))))
    print("KERNEL_OK")
</pallas_src>

<mosaic_0001>
module attributes {stable_mosaic.version = 11 : i64} {
  func.func @kernel(%arg0: i32, %arg1: memref<1x16x32xf32, #tpu.memory_space<vmem>>, %arg2: memref<32x128xf32, #tpu.memory_space<vmem>>, %arg3: memref<1x128xf32, #tpu.memory_space<vmem>>, %arg4: memref<16x32xf32, #tpu.memory_space<vmem>>, %arg5: memref<6x32xf32, #tpu.memory_space<vmem>>, %arg6: memref<32x64xf32, #tpu.memory_space<vmem>>, %arg7: memref<1x64xf32, #tpu.memory_space<vmem>>, %arg8: memref<64x32xf32, #tpu.memory_space<vmem>>, %arg9: memref<2x32xf32, #tpu.memory_space<vmem>>) attributes {dimension_semantics = [#tpu.dimension_semantics<parallel>], iteration_bounds = array<i64: 1>, scalar_prefetch = 0 : i64, scratch_operands = 0 : i64, tpu.core_type = #tpu.core_type<tc>, window_params = [{transform_indices = @transform_0, window_bounds = array<i64: 1, 16, 32>}, {pipeline_mode = #tpu.pipeline_mode<synchronous>, transform_indices = @transform_1, window_bounds = array<i64: 32, 128>}, {pipeline_mode = #tpu.pipeline_mode<synchronous>, transform_indices = @transform_2, window_bounds = array<i64: 1, 128>}, {pipeline_mode = #tpu.pipeline_mode<synchronous>, transform_indices = @transform_3, window_bounds = array<i64: 16, 32>}, {pipeline_mode = #tpu.pipeline_mode<synchronous>, transform_indices = @transform_4, window_bounds = array<i64: 6, 32>}, {pipeline_mode = #tpu.pipeline_mode<synchronous>, transform_indices = @transform_5, window_bounds = array<i64: 32, 64>}, {pipeline_mode = #tpu.pipeline_mode<synchronous>, transform_indices = @transform_6, window_bounds = array<i64: 1, 64>}, {pipeline_mode = #tpu.pipeline_mode<synchronous>, transform_indices = @transform_7, window_bounds = array<i64: 64, 32>}, {transform_indices = @transform_8, window_bounds = array<i64: 2, 32>}]} {
    %c0 = arith.constant 0 : index
    %c0_0 = arith.constant 0 : index
    %c0_1 = arith.constant 0 : index
    %0 = vector.load %arg1[%c0, %c0_0, %c0_1] : memref<1x16x32xf32, #tpu.memory_space<vmem>>, vector<1x16x32xf32>
    %1 = vector.shape_cast %0 : vector<1x16x32xf32> to vector<16x32xf32>
    %c0_2 = arith.constant 0 : index
    %c0_3 = arith.constant 0 : index
    %2 = vector.load %arg5[%c0_2, %c0_3] : memref<6x32xf32, #tpu.memory_space<vmem>>, vector<6x32xf32>
    %3 = vector.extract_strided_slice %2 {offsets = [0, 0], sizes = [1, 32], strides = [1, 1]} : vector<6x32xf32> to vector<1x32xf32>
    %4 = vector.extract_strided_slice %2 {offsets = [1, 0], sizes = [1, 32], strides = [1, 1]} : vector<6x32xf32> to vector<1x32xf32>
    %5 = vector.extract_strided_slice %2 {offsets = [2, 0], sizes = [1, 32], strides = [1, 1]} : vector<6x32xf32> to vector<1x32xf32>
    %6 = vector.extract_strided_slice %2 {offsets = [3, 0], sizes = [1, 32], strides = [1, 1]} : vector<6x32xf32> to vector<1x32xf32>
    %7 = vector.extract_strided_slice %2 {offsets = [4, 0], sizes = [1, 32], strides = [1, 1]} : vector<6x32xf32> to vector<1x32xf32>
    %8 = vector.extract_strided_slice %2 {offsets = [5, 0], sizes = [1, 32], strides = [1, 1]} : vector<6x32xf32> to vector<1x32xf32>
    %cst = arith.constant dense<0.000000e+00> : vector<16xf32>
    %9 = vector.multi_reduction <add>, %1, %cst [1] : vector<16x32xf32> to vector<16xf32>
    %10 = vector.shape_cast %9 : vector<16xf32> to vector<16x1xf32>
    %cst_4 = arith.constant 3.200000e+01 : f32
    %11 = vector.broadcast %cst_4 : f32 to vector<16x1xf32>
    %12 = arith.divf %10, %11 : vector<16x1xf32>
    %13 = arith.mulf %1, %1 : vector<16x32xf32>
    %cst_5 = arith.constant dense<0.000000e+00> : vector<16xf32>
    %14 = vector.multi_reduction <add>, %13, %cst_5 [1] : vector<16x32xf32> to vector<16xf32>
    %15 = vector.shape_cast %14 : vector<16xf32> to vector<16x1xf32>
    %cst_6 = arith.constant 3.200000e+01 : f32
    %16 = vector.broadcast %cst_6 : f32 to vector<16x1xf32>
    %17 = arith.divf %15, %16 : vector<16x1xf32>
    %18 = arith.mulf %12, %12 : vector<16x1xf32>
    %19 = arith.subf %17, %18 : vector<16x1xf32>
    %20 = vector.broadcast %12 : vector<16x1xf32> to vector<16x32xf32>
    %21 = arith.subf %1, %20 : vector<16x32xf32>
    %cst_7 = arith.constant 9.99999974E-6 : f32
    %22 = vector.broadcast %cst_7 : f32 to vector<16x1xf32>
    %23 = arith.addf %19, %22 : vector<16x1xf32>
    %24 = math.rsqrt %23 : vector<16x1xf32>
    %25 = vector.broadcast %24 : vector<16x1xf32> to vector<16x32xf32>
    %26 = arith.mulf %21, %25 : vector<16x32xf32>
    %27 = vector.broadcast %3 : vector<1x32xf32> to vector<16x32xf32>
    %28 = arith.mulf %26, %27 : vector<16x32xf32>
    %29 = vector.broadcast %4 : vector<1x32xf32> to vector<16x32xf32>
    %30 = arith.addf %28, %29 : vector<16x32xf32>
    %31 = arith.negf %30 : vector<16x32xf32>
    %32 = math.exp %31 : vector<16x32xf32>
    %cst_8 = arith.constant 1.000000e+00 : f32
    %33 = vector.broadcast %cst_8 : f32 to vector<16x32xf32>
    %34 = arith.addf %33, %32 : vector<16x32xf32>
    %35 = arith.divf %33, %34 : vector<16x32xf32>
    %c0_9 = arith.constant 0 : index
    %c0_10 = arith.constant 0 : index
    %36 = vector.load %arg2[%c0_9, %c0_10] : memref<32x128xf32, #tpu.memory_space<vmem>>, vector<32x128xf32>
    %cst_11 = arith.constant dense<0.000000e+00> : vector<16x128xf32>
    %37 = tpu.matmul %30, %36, %cst_11 {dimension_numbers = #tpu.dot_dimension_numbers<[1], [0], [0], [1], [0, 0, 1, 1], [], []>} : vector<16x32xf32>, vector<32x128xf32>, vector<16x128xf32> -> vector<16x128xf32>
    %c0_12 = arith.constant 0 : index
    %c0_13 = arith.constant 0 : index
    %38 = vector.load %arg3[%c0_12, %c0_13] : memref<1x128xf32, #tpu.memory_space<vmem>>, vector<1x128xf32>
    %39 = vector.broadcast %38 : vector<1x128xf32> to vector<16x128xf32>
    %40 = arith.addf %37, %39 : vector<16x128xf32>
    %41 = vector.extract_strided_slice %40 {offsets = [0, 0], sizes = [16, 32], strides = [1, 1]} : vector<16x128xf32> to vector<16x32xf32>
    %42 = vector.extract_strided_slice %40 {offsets = [0, 32], sizes = [16, 32], strides = [1, 1]} : vector<16x128xf32> to vector<16x32xf32>
    %43 = vector.extract_strided_slice %40 {offsets = [0, 64], sizes = [16, 32], strides = [1, 1]} : vector<16x128xf32> to vector<16x32xf32>
    %44 = vector.extract_strided_slice %40 {offsets = [0, 96], sizes = [16, 32], strides = [1, 1]} : vector<16x128xf32> to vector<16x32xf32>
    %c0_14 = arith.constant 0 : index
    %c0_15 = arith.constant 0 : index
    %45 = vector.load %arg4[%c0_14, %c0_15] : memref<16x32xf32, #tpu.memory_space<vmem>>, vector<16x32xf32>
    %cst_16 = arith.constant 0.000000e+00 : f32
    %46 = vector.broadcast %cst_16 : f32 to vector<2x32xf32>
    %cst_17 = arith.constant 0.000000e+00 : f32
    %47 = vector.broadcast %cst_17 : f32 to vector<2x32xf32>
    %cst_18 = arith.constant 0.000000e+00 : f32
    %48 = vector.broadcast %cst_18 : f32 to vector<2x32xf32>
    %cst_19 = arith.constant 0.000000e+00 : f32
    %49 = vector.broadcast %cst_19 : f32 to vector<2x32xf32>
    %cst_20 = arith.constant 0.000000e+00 : f32
    %50 = vector.broadcast %cst_20 : f32 to vector<2x32xf32>
    %51 = vector.extract_strided_slice %30 {offsets = [0, 0], sizes = [2, 32], strides = [1, 1]} : vector<16x32xf32> to vector<2x32xf32>
    %52 = vector.extract_strided_slice %35 {offsets = [0, 0], sizes = [2, 32], strides = [1, 1]} : vector<16x32xf32> to vector<2x32xf32>
    %53 = vector.extract_strided_slice %43 {offsets = [0, 0], sizes = [2, 32], strides = [1, 1]} : vector<16x32xf32> to vector<2x32xf32>
    %54 = vector.extract_strided_slice %45 {offsets = [0, 0], sizes = [1, 32], strides = [1, 1]} : vector<16x32xf32> to vector<1x32xf32>
    %55 = vector.broadcast %54 : vector<1x32xf32> to vector<2x32xf32>
    %56 = arith.addf %53, %55 : vector<2x32xf32>
    %57 = arith.negf %56 : vector<2x32xf32>
    %58 = math.exp %57 : vector<2x32xf32>
    %cst_21 = arith.constant 1.000000e+00 : f32
    %59 = vector.broadcast %cst_21 : f32 to vector<2x32xf32>
    %60 = arith.addf %59, %58 : vector<2x32xf32>
    %61 = arith.divf %59, %60 : vector<2x32xf32>
    %62 = vector.extract_strided_slice %45 {offsets = [8, 0], sizes = [1, 32], strides = [1, 1]} : vector<16x32xf32> to vector<1x32xf32>
    %63 = vector.broadcast %62 : vector<1x32xf32> to vector<2x32xf32>
    %64 = arith.mulf %61, %63 : vector<2x32xf32>
    %65 = vector.extract_strided_slice %41 {offsets = [0, 0], sizes = [2, 32], strides = [1, 1]} : vector<16x32xf32> to vector<2x32xf32>
    %66 = arith.mulf %61, %65 : vector<2x32xf32>
    %67 = arith.mulf %64, %46 : vector<2x32xf32>
    %68 = arith.mulf %66, %51 : vector<2x32xf32>
    %69 = arith.addf %67, %68 : vector<2x32xf32>
    %70 = vector.extract_strided_slice %42 {offsets = [0, 0], sizes = [2, 32], strides = [1, 1]} : vector<16x32xf32> to vector<2x32xf32>
    %71 = arith.mulf %70, %69 : vector<2x32xf32>
    %72 = arith.mulf %71, %52 : vector<2x32xf32>
    %73 = arith.addf %47, %72 : vector<2x32xf32>
    %74 = arith.mulf %51, %52 : vector<2x32xf32>
    %75 = arith.addf %48, %74 : vector<2x32xf32>
    %76 = vector.extract_strided_slice %1 {offsets = [0, 0], sizes = [2, 32], strides = [1, 1]} : vector<16x32xf32> to vector<2x32xf32>
    %77 = arith.addf %49, %76 : vector<2x32xf32>
    %78 = vector.extract_strided_slice %44 {offsets = [0, 0], sizes = [2, 32], strides = [1, 1]} : vector<16x32xf32> to vector<2x32xf32>
    %79 = arith.addf %50, %78 : vector<2x32xf32>
    %80 = vector.extract_strided_slice %30 {offsets = [2, 0], sizes = [2, 32], strides = [1, 1]} : vector<16x32xf32> to vector<2x32xf32>
    %81 = vector.extract_strided_slice %35 {offsets = [2, 0], sizes = [2, 32], strides = [1, 1]} : vector<16x32xf32> to vector<2x32xf32>
    %82 = vector.extract_strided_slice %43 {offsets = [2, 0], sizes = [2, 32], strides = [1, 1]} : vector<16x32xf32> to vector<2x32xf32>
    %83 = vector.extract_strided_slice %45 {offsets = [1, 0], sizes = [1, 32], strides = [1, 1]} : vector<16x32xf32> to vector<1x32xf32>
    %84 = vector.broadcast %83 : vector<1x32xf32> to vector<2x32xf32>
    %85 = arith.addf %82, %84 : vector<2x32xf32>
    %86 = arith.negf %85 : vector<2x32xf32>
    %87 = math.exp %86 : vector<2x32xf32>
    %cst_22 = arith.constant 1.000000e+00 : f32
    %88 = vector.broadcast %cst_22 : f32 to vector<2x32xf32>
    %89 = arith.addf %88, %87 : vector<2x32xf32>
    %90 = arith.divf %88, %89 : vector<2x32xf32>
    %91 = vector.extract_strided_slice %45 {offsets = [9, 0], sizes = [1, 32], strides = [1, 1]} : vector<16x32xf32> to vector<1x32xf32>
    %92 = vector.broadcast %91 : vector<1x32xf32> to vector<2x32xf32>
    %93 = arith.mulf %90, %92 : vector<2x32xf32>
    %94 = vector.extract_strided_slice %41 {offsets = [2, 0], sizes = [2, 32], strides = [1, 1]} : vector<16x32xf32> to vector<2x32xf32>
    %95 = arith.mulf %90, %94 : vector<2x32xf32>
    %96 = arith.mulf %93, %69 : vector<2x32xf32>
    %97 = arith.mulf %95, %80 : vector<2x32xf32>
    %98 = arith.addf %96, %97 : vector<2x32xf32>
    %99 = vector.extract_strided_slice %42 {offsets = [2, 0], sizes = [2, 32], strides = [1, 1]} : vector<16x32xf32> to vector<2x32xf32>
    %100 = arith.mulf %99, %98 : vector<2x32xf32>
    %101 = arith.mulf %100, %81 : vector<2x32xf32>
    %102 = arith.addf %73, %101 : vector<2x32xf32>
    %103 = arith.mulf %80, %81 : vector<2x32xf32>
    %104 = arith.addf %75, %103 : vector<2x32xf32>
    %105 = vector.extract_strided_slice %1 {offsets = [2, 0], sizes = [2, 32], strides = [1, 1]} : vector<16x32xf32> to vector<2x32xf32>
    %106 = arith.addf %77, %105 : vector<2x32xf32>
    %107 = vector.extract_strided_slice %44 {offsets = [2, 0], sizes = [2, 32], strides = [1, 1]} : vector<16x32xf32> to vector<2x32xf32>
    %108 = arith.addf %79, %107 : vector<2x32xf32>
    %109 = vector.extract_strided_slice %30 {offsets = [4, 0], sizes = [2, 32], strides = [1, 1]} : vector<16x32xf32> to vector<2x32xf32>
    %110 = vector.extract_strided_slice %35 {offsets = [4, 0], sizes = [2, 32], strides = [1, 1]} : vector<16x32xf32> to vector<2x32xf32>
    %111 = vector.extract_strided_slice %43 {offsets = [4, 0], sizes = [2, 32], strides = [1, 1]} : vector<16x32xf32> to vector<2x32xf32>
    %112 = vector.extract_strided_slice %45 {offsets = [2, 0], sizes = [1, 32], strides = [1, 1]} : vector<16x32xf32> to vector<1x32xf32>
    %113 = vector.broadcast %112 : vector<1x32xf32> to vector<2x32xf32>
    %114 = arith.addf %111, %113 : vector<2x32xf32>
    %115 = arith.negf %114 : vector<2x32xf32>
    %116 = math.exp %115 : vector<2x32xf32>
    %cst_23 = arith.constant 1.000000e+00 : f32
    %117 = vector.broadcast %cst_23 : f32 to vector<2x32xf32>
    %118 = arith.addf %117, %116 : vector<2x32xf32>
    %119 = arith.divf %117, %118 : vector<2x32xf32>
    %120 = vector.extract_strided_slice %45 {offsets = [10, 0], sizes = [1, 32], strides = [1, 1]} : vector<16x32xf32> to vector<1x32xf32>
    %121 = vector.broadcast %120 : vector<1x32xf32> to vector<2x32xf32>
    %122 = arith.mulf %119, %121 : vector<2x32xf32>
    %123 = vector.extract_strided_slice %41 {offsets = [4, 0], sizes = [2, 32], strides = [1, 1]} : vector<16x32xf32> to vector<2x32xf32>
    %124 = arith.mulf %119, %123 : vector<2x32xf32>
    %125 = arith.mulf %122, %98 : vector<2x32xf32>
    %126 = arith.mulf %124, %109 : vector<2x32xf32>
    %127 = arith.addf %125, %126 : vector<2x32xf32>
    %128 = vector.extract_strided_slice %42 {offsets = [4, 0], sizes = [2, 32], strides = [1, 1]} : vector<16x32xf32> to vector<2x32xf32>
    %129 = arith.mulf %128, %127 : vector<2x32xf32>
    %130 = arith.mulf %129, %110 : vector<2x32xf32>
    %131 = arith.addf %102, %130 : vector<2x32xf32>
    %132 = arith.mulf %109, %110 : vector<2x32xf32>
    %133 = arith.addf %104, %132 : vector<2x32xf32>
    %134 = vector.extract_strided_slice %1 {offsets = [4, 0], sizes = [2, 32], strides = [1, 1]} : vector<16x32xf32> to vector<2x32xf32>
    %135 = arith.addf %106, %134 : vector<2x32xf32>
    %136 = vector.extract_strided_slice %44 {offsets = [4, 0], sizes = [2, 32], strides = [1, 1]} : vector<16x32xf32> to vector<2x32xf32>
    %137 = arith.addf %108, %136 : vector<2x32xf32>
    %138 = vector.extract_strided_slice %30 {offsets = [6, 0], sizes = [2, 32], strides = [1, 1]} : vector<16x32xf32> to vector<2x32xf32>
    %139 = vector.extract_strided_slice %35 {offsets = [6, 0], sizes = [2, 32], strides = [1, 1]} : vector<16x32xf32> to vector<2x32xf32>
    %140 = vector.extract_strided_slice %43 {offsets = [6, 0], sizes = [2, 32], strides = [1, 1]} : vector<16x32xf32> to vector<2x32xf32>
    %141 = vector.extract_strided_slice %45 {offsets = [3, 0], sizes = [1, 32], strides = [1, 1]} : vector<16x32xf32> to vector<1x32xf32>
    %142 = vector.broadcast %141 : vector<1x32xf32> to vector<2x32xf32>
    %143 = arith.addf %140, %142 : vector<2x32xf32>
    %144 = arith.negf %143 : vector<2x32xf32>
    %145 = math.exp %144 : vector<2x32xf32>
    %cst_24 = arith.constant 1.000000e+00 : f32
    %146 = vector.broadcast %cst_24 : f32 to vector<2x32xf32>
    %147 = arith.addf %146, %145 : vector<2x32xf32>
    %148 = arith.divf %146, %147 : vector<2x32xf32>
    %149 = vector.extract_strided_slice %45 {offsets = [11, 0], sizes = [1, 32], strides = [1, 1]} : vector<16x32xf32> to vector<1x32xf32>
    %150 = vector.broadcast %149 : vector<1x32xf32> to vector<2x32xf32>
    %151 = arith.mulf %148, %150 : vector<2x32xf32>
    %152 = vector.extract_strided_slice %41 {offsets = [6, 0], sizes = [2, 32], strides = [1, 1]} : vector<16x32xf32> to vector<2x32xf32>
    %153 = arith.mulf %148, %152 : vector<2x32xf32>
    %154 = arith.mulf %151, %127 : vector<2x32xf32>
    %155 = arith.mulf %153, %138 : vector<2x32xf32>
    %156 = arith.addf %154, %155 : vector<2x32xf32>
    %157 = vector.extract_strided_slice %42 {offsets = [6, 0], sizes = [2, 32], strides = [1, 1]} : vector<16x32xf32> to vector<2x32xf32>
    %158 = arith.mulf %157, %156 : vector<2x32xf32>
    %159 = arith.mulf %158, %139 : vector<2x32xf32>
    %160 = arith.addf %131, %159 : vector<2x32xf32>
    %161 = arith.mulf %138, %139 : vector<2x32xf32>
    %162 = arith.addf %133, %161 : vector<2x32xf32>
    %163 = vector.extract_strided_slice %1 {offsets = [6, 0], sizes = [2, 32], strides = [1, 1]} : vector<16x32xf32> to vector<2x32xf32>
    %164 = arith.addf %135, %163 : vector<2x32xf32>
    %165 = vector.extract_strided_slice %44 {offsets = [6, 0], sizes = [2, 32], strides = [1, 1]} : vector<16x32xf32> to vector<2x32xf32>
    %166 = arith.addf %137, %165 : vector<2x32xf32>
    %167 = vector.extract_strided_slice %30 {offsets = [8, 0], sizes = [2, 32], strides = [1, 1]} : vector<16x32xf32> to vector<2x32xf32>
    %168 = vector.extract_strided_slice %35 {offsets = [8, 0], sizes = [2, 32], strides = [1, 1]} : vector<16x32xf32> to vector<2x32xf32>
    %169 = vector.extract_strided_slice %43 {offsets = [8, 0], sizes = [2, 32], strides = [1, 1]} : vector<16x32xf32> to vector<2x32xf32>
    %170 = vector.extract_strided_slice %45 {offsets = [4, 0], sizes = [1, 32], strides = [1, 1]} : vector<16x32xf32> to vector<1x32xf32>
    %171 = vector.broadcast %170 : vector<1x32xf32> to vector<2x32xf32>
    %172 = arith.addf %169, %171 : vector<2x32xf32>
    %173 = arith.negf %172 : vector<2x32xf32>
    %174 = math.exp %173 : vector<2x32xf32>
    %cst_25 = arith.constant 1.000000e+00 : f32
    %175 = vector.broadcast %cst_25 : f32 to vector<2x32xf32>
    %176 = arith.addf %175, %174 : vector<2x32xf32>
    %177 = arith.divf %175, %176 : vector<2x32xf32>
    %178 = vector.extract_strided_slice %45 {offsets = [12, 0], sizes = [1, 32], strides = [1, 1]} : vector<16x32xf32> to vector<1x32xf32>
    %179 = vector.broadcast %178 : vector<1x32xf32> to vector<2x32xf32>
    %180 = arith.mulf %177, %179 : vector<2x32xf32>
    %181 = vector.extract_strided_slice %41 {offsets = [8, 0], sizes = [2, 32], strides = [1, 1]} : vector<16x32xf32> to vector<2x32xf32>
    %182 = arith.mulf %177, %181 : vector<2x32xf32>
    %183 = arith.mulf %180, %156 : vector<2x32xf32>
    %184 = arith.mulf %182, %167 : vector<2x32xf32>
    %185 = arith.addf %183, %184 : vector<2x32xf32>
    %186 = vector.extract_strided_slice %42 {offsets = [8, 0], sizes = [2, 32], strides = [1, 1]} : vector<16x32xf32> to vector<2x32xf32>
    %187 = arith.mulf %186, %185 : vector<2x32xf32>
    %188 = arith.mulf %187, %168 : vector<2x32xf32>
    %189 = arith.addf %160, %188 : vector<2x32xf32>
    %190 = arith.mulf %167, %168 : vector<2x32xf32>
    %191 = arith.addf %162, %190 : vector<2x32xf32>
    %192 = vector.extract_strided_slice %1 {offsets = [8, 0], sizes = [2, 32], strides = [1, 1]} : vector<16x32xf32> to vector<2x32xf32>
    %193 = arith.addf %164, %192 : vector<2x32xf32>
    %194 = vector.extract_strided_slice %44 {offsets = [8, 0], sizes = [2, 32], strides = [1, 1]} : vector<16x32xf32> to vector<2x32xf32>
    %195 = arith.addf %166, %194 : vector<2x32xf32>
    %196 = vector.extract_strided_slice %30 {offsets = [10, 0], sizes = [2, 32], strides = [1, 1]} : vector<16x32xf32> to vector<2x32xf32>
    %197 = vector.extract_strided_slice %35 {offsets = [10, 0], sizes = [2, 32], strides = [1, 1]} : vector<16x32xf32> to vector<2x32xf32>
    %198 = vector.extract_strided_slice %43 {offsets = [10, 0], sizes = [2, 32], strides = [1, 1]} : vector<16x32xf32> to vector<2x32xf32>
    %199 = vector.extract_strided_slice %45 {offsets = [5, 0], sizes = [1, 32], strides = [1, 1]} : vector<16x32xf32> to vector<1x32xf32>
    %200 = vector.broadcast %199 : vector<1x32xf32> to vector<2x32xf32>
    %201 = arith.addf %198, %200 : vector<2x32xf32>
    %202 = arith.negf %201 : vector<2x32xf32>
    %203 = math.exp %202 : vector<2x32xf32>
    %cst_26 = arith.constant 1.000000e+00 : f32
    %204 = vector.broadcast %cst_26 : f32 to vector<2x32xf32>
    %205 = arith.addf %204, %203 : vector<2x32xf32>
    %206 = arith.divf %204, %205 : vector<2x32xf32>
    %207 = vector.extract_strided_slice %45 {offsets = [13, 0], sizes = [1, 32], strides = [1, 1]} : vector<16x32xf32> to vector<1x32xf32>
    %208 = vector.broadcast %207 : vector<1x32xf32> to vector<2x32xf32>
    %209 = arith.mulf %206, %208 : vector<2x32xf32>
    %210 = vector.extract_strided_slice %41 {offsets = [10, 0], sizes = [2, 32], strides = [1, 1]} : vector<16x32xf32> to vector<2x32xf32>
    %211 = arith.mulf %206, %210 : vector<2x32xf32>
    %212 = arith.mulf %209, %185 : vector<2x32xf32>
    %213 = arith.mulf %211, %196 : vector<2x32xf32>
    %214 = arith.addf %212, %213 : vector<2x32xf32>
    %215 = vector.extract_strided_slice %42 {offsets = [10, 0], sizes = [2, 32], strides = [1, 1]} : vector<16x32xf32> to vector<2x32xf32>
    %216 = arith.mulf %215, %214 : vector<2x32xf32>
    %217 = arith.mulf %216, %197 : vector<2x32xf32>
    %218 = arith.addf %189, %217 : vector<2x32xf32>
    %219 = arith.mulf %196, %197 : vector<2x32xf32>
    %220 = arith.addf %191, %219 : vector<2x32xf32>
    %221 = vector.extract_strided_slice %1 {offsets = [10, 0], sizes = [2, 32], strides = [1, 1]} : vector<16x32xf32> to vector<2x32xf32>
    %222 = arith.addf %193, %221 : vector<2x32xf32>
    %223 = vector.extract_strided_slice %44 {offsets = [10, 0], sizes = [2, 32], strides = [1, 1]} : vector<16x32xf32> to vector<2x32xf32>
    %224 = arith.addf %195, %223 : vector<2x32xf32>
    %225 = vector.extract_strided_slice %30 {offsets = [12, 0], sizes = [2, 32], strides = [1, 1]} : vector<16x32xf32> to vector<2x32xf32>
    %226 = vector.extract_strided_slice %35 {offsets = [12, 0], sizes = [2, 32], strides = [1, 1]} : vector<16x32xf32> to vector<2x32xf32>
    %227 = vector.extract_strided_slice %43 {offsets = [12, 0], sizes = [2, 32], strides = [1, 1]} : vector<16x32xf32> to vector<2x32xf32>
    %228 = vector.extract_strided_slice %45 {offsets = [6, 0], sizes = [1, 32], strides = [1, 1]} : vector<16x32xf32> to vector<1x32xf32>
    %229 = vector.broadcast %228 : vector<1x32xf32> to vector<2x32xf32>
    %230 = arith.addf %227, %229 : vector<2x32xf32>
    %231 = arith.negf %230 : vector<2x32xf32>
    %232 = math.exp %231 : vector<2x32xf32>
    %cst_27 = arith.constant 1.000000e+00 : f32
    %233 = vector.broadcast %cst_27 : f32 to vector<2x32xf32>
    %234 = arith.addf %233, %232 : vector<2x32xf32>
    %235 = arith.divf %233, %234 : vector<2x32xf32>
    %236 = vector.extract_strided_slice %45 {offsets = [14, 0], sizes = [1, 32], strides = [1, 1]} : vector<16x32xf32> to vector<1x32xf32>
    %237 = vector.broadcast %236 : vector<1x32xf32> to vector<2x32xf32>
    %238 = arith.mulf %235, %237 : vector<2x32xf32>
    %239 = vector.extract_strided_slice %41 {offsets = [12, 0], sizes = [2, 32], strides = [1, 1]} : vector<16x32xf32> to vector<2x32xf32>
    %240 = arith.mulf %235, %239 : vector<2x32xf32>
    %241 = arith.mulf %238, %214 : vector<2x32xf32>
    %242 = arith.mulf %240, %225 : vector<2x32xf32>
    %243 = arith.addf %241, %242 : vector<2x32xf32>
    %244 = vector.extract_strided_slice %42 {offsets = [12, 0], sizes = [2, 32], strides = [1, 1]} : vector<16x32xf32> to vector<2x32xf32>
    %245 = arith.mulf %244, %243 : vector<2x32xf32>
    %246 = arith.mulf %245, %226 : vector<2x32xf32>
    %247 = arith.addf %218, %246 : vector<2x32xf32>
    %248 = arith.mulf %225, %226 : vector<2x32xf32>
    %249 = arith.addf %220, %248 : vector<2x32xf32>
    %250 = vector.extract_strided_slice %1 {offsets = [12, 0], sizes = [2, 32], strides = [1, 1]} : vector<16x32xf32> to vector<2x32xf32>
    %251 = arith.addf %222, %250 : vector<2x32xf32>
    %252 = vector.extract_strided_slice %44 {offsets = [12, 0], sizes = [2, 32], strides = [1, 1]} : vector<16x32xf32> to vector<2x32xf32>
    %253 = arith.addf %224, %252 : vector<2x32xf32>
    %254 = vector.extract_strided_slice %30 {offsets = [14, 0], sizes = [2, 32], strides = [1, 1]} : vector<16x32xf32> to vector<2x32xf32>
    %255 = vector.extract_strided_slice %35 {offsets = [14, 0], sizes = [2, 32], strides = [1, 1]} : vector<16x32xf32> to vector<2x32xf32>
    %256 = vector.extract_strided_slice %43 {offsets = [14, 0], sizes = [2, 32], strides = [1, 1]} : vector<16x32xf32> to vector<2x32xf32>
    %257 = vector.extract_strided_slice %45 {offsets = [7, 0], sizes = [1, 32], strides = [1, 1]} : vector<16x32xf32> to vector<1x32xf32>
    %258 = vector.broadcast %257 : vector<1x32xf32> to vector<2x32xf32>
    %259 = arith.addf %256, %258 : vector<2x32xf32>
    %260 = arith.negf %259 : vector<2x32xf32>
    %261 = math.exp %260 : vector<2x32xf32>
    %cst_28 = arith.constant 1.000000e+00 : f32
    %262 = vector.broadcast %cst_28 : f32 to vector<2x32xf32>
    %263 = arith.addf %262, %261 : vector<2x32xf32>
    %264 = arith.divf %262, %263 : vector<2x32xf32>
    %265 = vector.extract_strided_slice %45 {offsets = [15, 0], sizes = [1, 32], strides = [1, 1]} : vector<16x32xf32> to vector<1x32xf32>
    %266 = vector.broadcast %265 : vector<1x32xf32> to vector<2x32xf32>
    %267 = arith.mulf %264, %266 : vector<2x32xf32>
    %268 = vector.extract_strided_slice %41 {offsets = [14, 0], sizes = [2, 32], strides = [1, 1]} : vector<16x32xf32> to vector<2x32xf32>
    %269 = arith.mulf %264, %268 : vector<2x32xf32>
    %270 = arith.mulf %267, %243 : vector<2x32xf32>
    %271 = arith.mulf %269, %254 : vector<2x32xf32>
    %272 = arith.addf %270, %271 : vector<2x32xf32>
    %273 = vector.extract_strided_slice %42 {offsets = [14, 0], sizes = [2, 32], strides = [1, 1]} : vector<16x32xf32> to vector<2x32xf32>
    %274 = arith.mulf %273, %272 : vector<2x32xf32>
    %275 = arith.mulf %274, %255 : vector<2x32xf32>
    %276 = arith.addf %247, %275 : vector<2x32xf32>
    %277 = arith.mulf %254, %255 : vector<2x32xf32>
    %278 = arith.addf %249, %277 : vector<2x32xf32>
    %279 = vector.extract_strided_slice %1 {offsets = [14, 0], sizes = [2, 32], strides = [1, 1]} : vector<16x32xf32> to vector<2x32xf32>
    %280 = arith.addf %251, %279 : vector<2x32xf32>
    %281 = vector.extract_strided_slice %44 {offsets = [14, 0], sizes = [2, 32], strides = [1, 1]} : vector<16x32xf32> to vector<2x32xf32>
    %282 = arith.addf %253, %281 : vector<2x32xf32>
    %cst_29 = arith.constant 1.250000e-01 : f32
    %283 = vector.broadcast %cst_29 : f32 to vector<2x32xf32>
    %284 = arith.mulf %282, %283 : vector<2x32xf32>
    %cst_30 = arith.constant 0.000000e+00 : f32
    %285 = vector.broadcast %cst_30 : f32 to vector<2x32xf32>
    %286 = arith.maximumf %284, %285 : vector<2x32xf32>
    %287 = arith.negf %286 : vector<2x32xf32>
    %288 = math.exp %287 : vector<2x32xf32>
    %cst_31 = arith.constant 1.000000e+00 : f32
    %289 = vector.broadcast %cst_31 : f32 to vector<2x32xf32>
    %290 = arith.addf %289, %288 : vector<2x32xf32>
    %291 = arith.divf %289, %290 : vector<2x32xf32>
    %292 = vector.broadcast %5 : vector<1x32xf32> to vector<2x32xf32>
    %293 = arith.addf %291, %292 : vector<2x32xf32>
    %294 = arith.addf %280, %276 : vector<2x32xf32>
    %295 = arith.mulf %293, %278 : vector<2x32xf32>
    %296 = arith.addf %294, %295 : vector<2x32xf32>
    %cst_32 = arith.constant 1.250000e-01 : f32
    %297 = vector.broadcast %cst_32 : f32 to vector<2x32xf32>
    %298 = arith.mulf %296, %297 : vector<2x32xf32>
    %cst_33 = arith.constant dense<0.000000e+00> : vector<2xf32>
    %299 = vector.multi_reduction <add>, %298, %cst_33 [1] : vector<2x32xf32> to vector<2xf32>
    %300 = vector.shape_cast %299 : vector<2xf32> to vector<2x1xf32>
    %cst_34 = arith.constant 3.200000e+01 : f32
    %301 = vector.broadcast %cst_34 : f32 to vector<2x1xf32>
    %302 = arith.divf %300, %301 : vector<2x1xf32>
    %303 = arith.mulf %298, %298 : vector<2x32xf32>
    %cst_35 = arith.constant dense<0.000000e+00> : vector<2xf32>
    %304 = vector.multi_reduction <add>, %303, %cst_35 [1] : vector<2x32xf32> to vector<2xf32>
    %305 = vector.shape_cast %304 : vector<2xf32> to vector<2x1xf32>
    %cst_36 = arith.constant 3.200000e+01 : f32
    %306 = vector.broadcast %cst_36 : f32 to vector<2x1xf32>
    %307 = arith.divf %305, %306 : vector<2x1xf32>
    %308 = arith.mulf %302, %302 : vector<2x1xf32>
    %309 = arith.subf %307, %308 : vector<2x1xf32>
    %310 = vector.broadcast %302 : vector<2x1xf32> to vector<2x32xf32>
    %311 = arith.subf %298, %310 : vector<2x32xf32>
    %cst_37 = arith.constant 9.99999974E-6 : f32
    %312 = vector.broadcast %cst_37 : f32 to vector<2x1xf32>
    %313 = arith.addf %309, %312 : vector<2x1xf32>
    %314 = math.rsqrt %313 : vector<2x1xf32>
    %315 = vector.broadcast %314 : vector<2x1xf32> to vector<2x32xf32>
    %316 = arith.mulf %311, %315 : vector<2x32xf32>
    %317 = vector.broadcast %6 : vector<1x32xf32> to vector<2x32xf32>
    %318 = arith.mulf %316, %317 : vector<2x32xf32>
    %319 = vector.broadcast %7 : vector<1x32xf32> to vector<2x32xf32>
    %320 = arith.addf %318, %319 : vector<2x32xf32>
    %c0_38 = arith.constant 0 : index
    %c0_39 = arith.constant 0 : index
    %321 = vector.load %arg6[%c0_38, %c0_39] : memref<32x64xf32, #tpu.memory_space<vmem>>, vector<32x64xf32>
    %cst_40 = arith.constant dense<0.000000e+00> : vector<2x64xf32>
    %322 = tpu.matmul %320, %321, %cst_40 {dimension_numbers = #tpu.dot_dimension_numbers<[1], [0], [0], [1], [0, 0, 1, 1], [], []>} : vector<2x32xf32>, vector<32x64xf32>, vector<2x64xf32> -> vector<2x64xf32>
    %c0_41 = arith.constant 0 : index
    %c0_42 = arith.constant 0 : index
    %323 = vector.load %arg7[%c0_41, %c0_42] : memref<1x64xf32, #tpu.memory_space<vmem>>, vector<1x64xf32>
    %324 = vector.broadcast %323 : vector<1x64xf32> to vector<2x64xf32>
    %325 = arith.addf %322, %324 : vector<2x64xf32>
    %cst_43 = arith.constant 5.000000e-01 : f32
    %326 = vector.broadcast %cst_43 : f32 to vector<2x64xf32>
    %327 = arith.mulf %326, %325 : vector<2x64xf32>
    %cst_44 = arith.constant 4.471500e-02 : f32
    %328 = vector.broadcast %cst_44 : f32 to vector<2x64xf32>
    %329 = arith.mulf %328, %325 : vector<2x64xf32>
    %330 = arith.mulf %329, %325 : vector<2x64xf32>
    %331 = arith.mulf %330, %325 : vector<2x64xf32>
    %332 = arith.addf %325, %331 : vector<2x64xf32>
    %cst_45 = arith.constant 0.797884583 : f32
    %333 = vector.broadcast %cst_45 : f32 to vector<2x64xf32>
    %334 = arith.mulf %333, %332 : vector<2x64xf32>
    %335 = math.tanh %334 : vector<2x64xf32>
    %cst_46 = arith.constant 1.000000e+00 : f32
    %336 = vector.broadcast %cst_46 : f32 to vector<2x64xf32>
    %337 = arith.addf %336, %335 : vector<2x64xf32>
    %338 = arith.mulf %327, %337 : vector<2x64xf32>
    %c0_47 = arith.constant 0 : index
    %c0_48 = arith.constant 0 : index
    %339 = vector.load %arg8[%c0_47, %c0_48] : memref<64x32xf32, #tpu.memory_space<vmem>>, vector<64x32xf32>
    %cst_49 = arith.constant dense<0.000000e+00> : vector<2x32xf32>
    %340 = tpu.matmul %338, %339, %cst_49 {dimension_numbers = #tpu.dot_dimension_numbers<[1], [0], [0], [1], [0, 0, 1, 1], [], []>} : vector<2x64xf32>, vector<64x32xf32>, vector<2x32xf32> -> vector<2x32xf32>
    %341 = vector.broadcast %8 : vector<1x32xf32> to vector<2x32xf32>
    %342 = arith.addf %340, %341 : vector<2x32xf32>
    %343 = arith.addf %342, %298 : vector<2x32xf32>
    %c0_50 = arith.constant 0 : index
    %c0_51 = arith.constant 0 : index
    %344 = vector.load %arg9[%c0_50, %c0_51] : memref<2x32xf32, #tpu.memory_space<vmem>>, vector<2x32xf32>
    tpu.vector_store %arg9[%c0_50, %c0_51], %343 {strides = array<i32>} : memref<2x32xf32, #tpu.memory_space<vmem>>, vector<2x32xf32>,
    return
  }
  func.func @transform_0(%arg0: i32) -> (i32, i32, i32) {
    %c0_i32 = arith.constant 0 : i32
    %c0_i32_0 = arith.constant 0 : i32
    %c0_i32_1 = arith.constant 0 : i32
    return %arg0, %c0_i32, %c0_i32_0 : i32, i32, i32
  }
  func.func @transform_1(%arg0: i32) -> (i32, i32) {
    %c0_i32 = arith.constant 0 : i32
    %c0_i32_0 = arith.constant 0 : i32
    %c0_i32_1 = arith.constant 0 : i32
    return %c0_i32, %c0_i32_0 : i32, i32
  }
  func.func @transform_2(%arg0: i32) -> (i32, i32) {
    %c0_i32 = arith.constant 0 : i32
    %c0_i32_0 = arith.constant 0 : i32
    %c0_i32_1 = arith.constant 0 : i32
    return %c0_i32, %c0_i32_0 : i32, i32
  }
  func.func @transform_3(%arg0: i32) -> (i32, i32) {
    %c0_i32 = arith.constant 0 : i32
    %c0_i32_0 = arith.constant 0 : i32
    %c0_i32_1 = arith.constant 0 : i32
    return %c0_i32, %c0_i32_0 : i32, i32
  }
  func.func @transform_4(%arg0: i32) -> (i32, i32) {
    %c0_i32 = arith.constant 0 : i32
    %c0_i32_0 = arith.constant 0 : i32
    %c0_i32_1 = arith.constant 0 : i32
    return %c0_i32, %c0_i32_0 : i32, i32
  }
  func.func @transform_5(%arg0: i32) -> (i32, i32) {
    %c0_i32 = arith.constant 0 : i32
    %c0_i32_0 = arith.constant 0 : i32
    %c0_i32_1 = arith.constant 0 : i32
    return %c0_i32, %c0_i32_0 : i32, i32
  }
  func.func @transform_6(%arg0: i32) -> (i32, i32) {
    %c0_i32 = arith.constant 0 : i32
    %c0_i32_0 = arith.constant 0 : i32
    %c0_i32_1 = arith.constant 0 : i32
    return %c0_i32, %c0_i32_0 : i32, i32
  }
  func.func @transform_7(%arg0: i32) -> (i32, i32) {
    %c0_i32 = arith.constant 0 : i32
    %c0_i32_0 = arith.constant 0 : i32
    %c0_i32_1 = arith.constant 0 : i32
    return %c0_i32, %c0_i32_0 : i32, i32
  }
  func.func @transform_8(%arg0: i32) -> (i32, i32) {
    %c0_i32 = arith.constant 0 : i32
    %c0_i32_0 = arith.constant 0 : i32
    return %arg0, %c0_i32 : i32, i32
  }
}

</mosaic_0001>

<llo_original>
// kernel: tpu_custom_call.1
$region0: #{tpu_custom_call.1}
  #allocation0 [shape = 'u32[]', space=smem, size = 0x4, offset = 0x4, fixed_abs, tag = 'smem constant byte address 0x4 - core index']
  #allocation1 [shape = 'u32[144,128]{1,0:T(1,128)}', space=vmem, size = 0x12000, scoped, tag = 'internal scratch']
  %s0 = inlined_call_operand.vmem [shape: f32[1,16,32], index: 0, kind: input, shape index: {}]
  %s1 = inlined_call_operand.vmem [shape: f32[32,128], index: 1, kind: input, shape index: {}]
  %s2 = inlined_call_operand.vmem [shape: f32[1,128], index: 2, kind: input, shape index: {}]
  %s3 = inlined_call_operand.vmem [shape: f32[16,32], index: 3, kind: input, shape index: {}]
  %s4 = inlined_call_operand.vmem [shape: f32[6,32], index: 4, kind: input, shape index: {}]
  %s5 = inlined_call_operand.vmem [shape: f32[32,64], index: 5, kind: input, shape index: {}]
  %s6 = inlined_call_operand.vmem [shape: f32[1,64], index: 6, kind: input, shape index: {}]
  %s7 = inlined_call_operand.vmem [shape: f32[64,32], index: 7, kind: input, shape index: {}]
  %s8 = inlined_call_operand.hbm [shape: f32[2,32], index: 8, kind: output, shape index: {}]
  %s9 = sld [smem:[#allocation0]]
  $region42: #{tpu_custom_call.1} parent=0
    _
  %s11 = ssub.s32 1, %s9
  %s12 = scalar_select 0, %s11, %s9
  $region1: #{tpu_custom_call.1} parent=0
    #allocation2 [shape = 'u8[1024]{0}', space=vmem, size = 0x400, scoped, tag = 'output window, operand 0, single buffered']
    #allocation3 [shape = 's32[1]{0}', space=sflag, size = 0x4, scoped, tag = 'scoped memory for tpu_custom_call.1']
    %13 = vsyncpa [#allocation3], 0
    // Predicated region
    $region2: #{tpu_custom_call.1} parent=1 // pred_check
      _
    $region3: #{tpu_custom_call.1} parent=1 // pred_check_branch
      %15 = sbr.rel (0) target = $region5
    $region4: #{tpu_custom_call.1} parent=1 // pred_region
      _
    $region5: #{tpu_custom_call.1} parent=1 // pred_fallthru
      _
    // Predicated region
    $region6: #{tpu_custom_call.1} parent=1 // pred_check
      _
    $region7: #{tpu_custom_call.1} parent=1 // pred_check_branch
      %17 = sbr.rel (0) target = $region9
    $region8: #{tpu_custom_call.1} parent=1 // pred_region
      _
    $region9: #{tpu_custom_call.1} parent=1 // pred_fallthru
      _
    // Predicated region
    $region10: #{tpu_custom_call.1} parent=1 // pred_check
      _
    $region11: #{tpu_custom_call.1} parent=1 // pred_check_branch
      %19 = sbr.rel (0) target = $region13
    $region12: #{tpu_custom_call.1} parent=1 // pred_region
      _
    $region13: #{tpu_custom_call.1} parent=1 // pred_fallthru
      _
    // Predicated region
    $region14: #{tpu_custom_call.1} parent=1 // pred_check
      _
    $region15: #{tpu_custom_call.1} parent=1 // pred_check_branch
      %21 = sbr.rel (0) target = $region17
    $region16: #{tpu_custom_call.1} parent=1 // pred_region
      _
    $region17: #{tpu_custom_call.1} parent=1 // pred_fallthru
      _
    // Predicated region
    $region18: #{tpu_custom_call.1} parent=1 // pred_check
      _
    $region19: #{tpu_custom_call.1} parent=1 // pred_check_branch
      %23 = sbr.rel (0) target = $region21
    $region20: #{tpu_custom_call.1} parent=1 // pred_region
      _
    $region21: #{tpu_custom_call.1} parent=1 // pred_fallthru
      _
    // Predicated region
    $region22: #{tpu_custom_call.1} parent=1 // pred_check
      _
    $region23: #{tpu_custom_call.1} parent=1 // pred_check_branch
      %25 = sbr.rel (0) target = $region25
    $region24: #{tpu_custom_call.1} parent=1 // pred_region
      _
    $region25: #{tpu_custom_call.1} parent=1 // pred_fallthru
      _
    // Predicated region
    $region26: #{tpu_custom_call.1} parent=1 // pred_check
      _
    $region27: #{tpu_custom_call.1} parent=1 // pred_check_branch
      %27 = sbr.rel (0) target = $region29
    $region28: #{tpu_custom_call.1} parent=1 // pred_region
      _
    $region29: #{tpu_custom_call.1} parent=1 // pred_fallthru
      _
    // Predicated region
    $region30: #{tpu_custom_call.1} parent=1 // pred_check
      _
    $region31: #{tpu_custom_call.1} parent=1 // pred_check_branch
      %29 = sbr.rel (0) target = $region33
    $region32: #{tpu_custom_call.1} parent=1 // pred_region
      _
    $region33: #{tpu_custom_call.1} parent=1 // pred_fallthru
      _
    %v30 = vld [vmem:[%s0] sm:$0xff]
    %v31 = vld [vmem:[%s0 + $0x8] sm:$0xff]
    %v32 = vld [vmem:[%s4] sm:$0x3f]
    %vm33 = vcmask 261120
    %v34 = vsel %vm33, %v30, 0.0
    %35 = vadd.xlane.f32.xlu0 %v34
    %v36 = vpop.xlane.xlu0 %35
    %v37 = vsel %vm33, %v31, 0.0
    %38 = vadd.xlane.f32.xlu0 %v37
    %v39 = vpop.xlane.xlu0 %38
    %v40 = vrcp.pop 32.0
    %v41 = vmul.f32 %v36, %v40
    %v42 = vmul.f32 %v39, %v40
    %v43 = vmul.f32 %v30, %v30
    %v44 = vmul.f32 %v31, %v31
    %v45 = vsel %vm33, %v43, 0.0
    %46 = vadd.xlane.f32.xlu0 %v45
    %v47 = vpop.xlane.xlu0 %46
    %v48 = vsel %vm33, %v44, 0.0
    %49 = vadd.xlane.f32.xlu0 %v48
    %v50 = vpop.xlane.xlu0 %49
    %v51 = vmul.f32 %v47, %v40
    %v52 = vmul.f32 %v50, %v40
    %v53 = vmul.f32 %v41, %v41
    %v54 = vmul.f32 %v42, %v42
    %v55 = vsub.f32 %v51, %v53
    %v56 = vsub.f32 %v52, %v54
    %v57 = vsub.f32 %v30, %v41
    %v58 = vsub.f32 %v31, %v42
    %v59 = vadd.f32 %v55, 1e-05
    %v60 = vadd.f32 %v56, 1e-05
    %v61 = vrsqrt.pop %v59
    %v62 = vrsqrt.pop %v60
    %v63 = vmul.f32 %v57, %v61
    %v64 = vmul.f32 %v58, %v62
    %v65 = vlaneseq
    %v66 = vshrl.u32 %v65, 7
    %v67 = vsub.s32 0, %v66
    %v68 = vrot.slane %v32, %v67
    %v69 = vmul.f32 %v63, %v68
    %v70 = vmul.f32 %v64, %v68
    %v71 = vlaneseq
    %v72 = vshrl.u32 %v71, 7
    %v73 = vsub.s32 1, %v72
    %v74 = vrot.slane %v32, %v73
    %v75 = vadd.f32 %v69, %v74
    %v76 = vadd.f32 %v70, %v74
    %v77 = vxor.u32 %v75, 2147483648
    %v78 = vxor.u32 %v76, 2147483648
    %v79 = vmul.f32 %v77, 1.442695
    %v80 = vpow.pop %v79
    %v81 = vmul.f32 %v78, 1.442695
    %v82 = vpow.pop %v81
    %v83 = vadd.f32 %v80, 1.0
    %v84 = vadd.f32 %v82, 1.0
    %v85 = vrcp.pop %v83
    %v86 = vmul.f32 1.0, %v85
    %v87 = vrcp.pop %v84
    %v88 = vmul.f32 1.0, %v87
    %v89 = vld [vmem:[%s1] sm:$0xff]
    %v90 = vld [vmem:[%s1 + $0x8] sm:$0xff]
    %v91 = vld [vmem:[%s1 + $0x10] sm:$0xff]
    %v92 = vld [vmem:[%s1 + $0x18] sm:$0xff]
    %v93 = vld [vmem:[%s2] sm:$0x1]
    %v95 = vlaneseq
    %v96 = vshrl.u32 %v95, 7
    %v97 = vsub.s32 0, %v96
    %v98 = vrot.slane %v93, %v97
    %v101 = vsel %vm33, %v75, 0
    %v104 = vsel %vm33, %v76, 0
    %106 = vmatprep.subr.mxu0 0.0
    %107 = vmatpush1.msra.mxu0 %v89
    %108 = vmatprep.subr.mxu0 0.0
    %109 = vmatpush1.msra.mxu0 %v90
    %110 = vmatprep.subr.mxu0 0.0
    %111 = vmatpush1.msra.mxu0 %v91
    %112 = vmatprep.subr.mxu0 0.0
    %113 = vmatpush1.msra.mxu0 %v92
    %114 = vmatprep.subr.mxu0 0.0
    %115 = vmatpush1.msra.mxu0 0.0
    %116 = vmatprep.subr.mxu0 0.0
    %117 = vmatpush1.msra.mxu0 0.0
    %118 = vmatprep.subr.mxu0 0.0
    %119 = vmatpush1.msra.mxu0 0.0
    %120 = vmatprep.subr.mxu0 0.0
    %121 = vmatpush1.msra.mxu0 0.0
    %122 = vmatprep.subr.mxu0 0.0
    %123 = vmatpush1.msra.mxu0 0.0
    %124 = vmatprep.subr.mxu0 0.0
    %125 = vmatpush1.msra.mxu0 0.0
    %126 = vmatprep.subr.mxu0 0.0
    %127 = vmatpush1.msra.mxu0 0.0
    %128 = vmatprep.subr.mxu0 0.0
    %129 = vmatpush1.msra.mxu0 0.0
    %130 = vmatprep.subr.mxu0 0.0
    %131 = vmatpush1.msra.mxu0 0.0
    %132 = vmatprep.subr.mxu0 0.0
    %133 = vmatpush1.msra.mxu0 0.0
    %134 = vmatprep.subr.mxu0 0.0
    %135 = vmatpush1.msra.mxu0 0.0
    %136 = vmatprep.subr.mxu0 0.0
    %137 = vmatpush1.msra.mxu0 0.0
    %138 = vmatprep.subr.mxu0 0.0
    %139 = vmatpush1.msra.mxu0 0.0
    %140 = vmatprep.subr.mxu0 0.0
    %141 = vmatpush1.msra.mxu0 0.0
    %142 = vmatprep.subr.mxu0 0.0
    %143 = vmatpush1.msra.mxu0 0.0
    %144 = vmatprep.subr.mxu0 0.0
    %145 = vmatpush1.msra.mxu0 0.0
    %146 = vmatprep.subr.mxu0 0.0
    %147 = vmatpush1.msra.mxu0 0.0
    %148 = vmatprep.subr.mxu0 0.0
    %149 = vmatpush1.msra.mxu0 0.0
    %150 = vmatprep.subr.mxu0 0.0
    %151 = vmatpush1.msra.mxu0 0.0
    %152 = vmatprep.subr.mxu0 0.0
    %153 = vmatpush1.msra.mxu0 0.0
    %154 = vmatprep.subr.mxu0 0.0
    %155 = vmatpush1.msra.mxu0 0.0
    %156 = vmatprep.subr.mxu0 0.0
    %157 = vmatpush1.msra.mxu0 0.0
    %158 = vmatprep.subr.mxu0 0.0
    %159 = vmatpush1.msra.mxu0 0.0
    %160 = vmatprep.subr.mxu0 0.0
    %161 = vmatpush1.msra.mxu0 0.0
    %162 = vmatprep.subr.mxu0 0.0
    %163 = vmatpush1.msra.mxu0 0.0
    %164 = vmatprep.subr.mxu0 0.0
    %165 = vmatpush1.msra.mxu0 0.0
    %166 = vmatprep.subr.mxu0 0.0
    %167 = vmatpush1.msra.mxu0 0.0
    %168 = vmatprep.subr.mxu0 0.0
    %169 = vmatpush1.msra.mxu0 0.0
    %170 = vmatprep.mubr.f32.mxu0 0.0
    %171 = vmatmul.mubr.f32.gmra.mrb[0].mxu0 %v101
    %v172 = vpop.f32.mrb[0].mxu0
    %v173 = vadd.f32 %v98, %v172
    %v174 = vpop.f32.mrb[0].mxu0
    %175 = vmatprep.mubr.f32.mxu0 0.0
    %176 = vmatmul.mubr.f32.gmra.mrb[0].mxu0 %v104
    %v177 = vpop.f32.mrb[0].mxu0
    %v178 = vadd.f32 %v98, %v177
    %v179 = vpop.f32.mrb[0].mxu0
    %180 = vdwg.mxu0
    %v181 = vld [vmem:[%s3] sm:$0xff]
    %v182 = vld [vmem:[%s3 + $0x8] sm:$0xff]
    %v183 = vlaneseq
    %v184 = vshrl.u32 %v183, 7
    %v185 = vsub.s32 0, %v184
    %v186 = vrot.slane %v181, %v185
    %188 = vrot.lane.b32.xlu0 %v186, 64
    %v189 = vpop.permute.xlu0 %188
    %v191 = vadd.f32 %v173, %v189
    %v192 = vxor.u32 %v191, 2147483648
    %v193 = vmul.f32 %v192, 1.442695
    %v194 = vpow.pop %v193
    %v195 = vadd.f32 %v194, 1.0
    %v196 = vrcp.pop %v195
    %v197 = vmul.f32 1.0, %v196
    %v198 = vlaneseq
    %v199 = vshrl.u32 %v198, 7
    %v200 = vsub.s32 0, %v199
    %v201 = vrot.slane %v182, %v200
    %203 = vrot.lane.b32.xlu0 %v201, 64
    %v204 = vpop.permute.xlu0 %203
    %v206 = vmul.f32 %v197, %v204
    %208 = vrot.lane.b32.xlu0 %v173, 64
    %v209 = vpop.permute.xlu0 %208
    %v211 = vmul.f32 %v197, %v209
    %v212 = vmul.f32 %v206, 0.0
    %213 = vrot.lane.b32.xlu0 %v75, 64
    %v214 = vpop.permute.xlu0 %213
    %v216 = vmul.f32 %v211, %v214
    %v217 = vadd.f32 %v212, %v216
    %219 = vrot.lane.b32.xlu0 %v217, 96
    %v220 = vpop.permute.xlu0 %219
    %v222 = vmul.f32 %v173, %v220
    %224 = vrot.lane.b32.xlu0 %v86, 32
    %v225 = vpop.permute.xlu0 %224
    %v227 = vmul.f32 %v222, %v225
    %v228 = vadd.f32 %v227, 0.0
    %v229 = vmul.f32 %v75, %v86
    %v230 = vadd.f32 %v229, 0.0
    %v231 = vadd.f32 %v30, 0.0
    %v232 = vadd.f32 %v173, 0.0
    %v233 = vlaneseq
    %v234 = vshrl.u32 %v233, 7
    %v235 = vsub.s32 1, %v234
    %v236 = vrot.slane %v181, %v235
    %238 = vrot.lane.b32.xlu0 %v236, 64
    %v239 = vpop.permute.xlu0 %238
    %v241 = vadd.f32 %v173, %v239
    %v242 = vxor.u32 %v241, 2147483648
    %v243 = vmul.f32 %v242, 1.442695
    %v244 = vpow.pop %v243
    %v245 = vadd.f32 %v244, 1.0
    %v246 = vrcp.pop %v245
    %v247 = vmul.f32 1.0, %v246
    %v248 = vlaneseq
    %v249 = vshrl.u32 %v248, 7
    %v250 = vsub.s32 1, %v249
    %v251 = vrot.slane %v182, %v250
    %253 = vrot.lane.b32.xlu0 %v251, 64
    %v254 = vpop.permute.xlu0 %253
    %v256 = vmul.f32 %v247, %v254
    %v257 = vmul.f32 %v247, %v209
    %v258 = vrot.slane %v217, 6
    %v260 = vmul.f32 %v256, %v258
    %v261 = vmul.f32 %v257, %v214
    %v262 = vadd.f32 %v260, %v261
    %264 = vrot.lane.b32.xlu0 %v262, 96
    %v265 = vpop.permute.xlu0 %264
    %v267 = vmul.f32 %v173, %v265
    %v268 = vmul.f32 %v267, %v225
    %v270 = vrot.slane %v268, 2
    %v272 = vadd.f32 %v228, %v270
    %v274 = vrot.slane %v229, 2
    %v276 = vadd.f32 %v230, %v274
    %v278 = vrot.slane %v30, 2
    %v280 = vadd.f32 %v231, %v278
    %v281 = vrot.slane %v173, 2
    %v283 = vadd.f32 %v232, %v281
    %v284 = vlaneseq
    %v285 = vshrl.u32 %v284, 7
    %v286 = vsub.s32 2, %v285
    %v287 = vrot.slane %v181, %v286
    %289 = vrot.lane.b32.xlu0 %v287, 64
    %v290 = vpop.permute.xlu0 %289
    %v292 = vadd.f32 %v173, %v290
    %v293 = vxor.u32 %v292, 2147483648
    %v294 = vmul.f32 %v293, 1.442695
    %v295 = vpow.pop %v294
    %v296 = vadd.f32 %v295, 1.0
    %v297 = vrcp.pop %v296
    %v298 = vmul.f32 1.0, %v297
    %v299 = vlaneseq
    %v300 = vshrl.u32 %v299, 7
    %v301 = vsub.s32 2, %v300
    %v302 = vrot.slane %v182, %v301
    %304 = vrot.lane.b32.xlu0 %v302, 64
    %v305 = vpop.permute.xlu0 %304
    %v307 = vmul.f32 %v298, %v305
    %v308 = vmul.f32 %v298, %v209
    %v309 = vrot.slane %v262, 6
    %v311 = vmul.f32 %v307, %v309
    %v312 = vmul.f32 %v308, %v214
    %v313 = vadd.f32 %v311, %v312
    %315 = vrot.lane.b32.xlu0 %v313, 96
    %v316 = vpop.permute.xlu0 %315
    %v318 = vmul.f32 %v173, %v316
    %v319 = vmul.f32 %v318, %v225
    %v321 = vrot.slane %v319, 4
    %v323 = vadd.f32 %v272, %v321
    %v324 = vrot.slane %v229, 4
    %v326 = vadd.f32 %v276, %v324
    %v327 = vrot.slane %v30, 4
    %v329 = vadd.f32 %v280, %v327
    %v330 = vrot.slane %v173, 4
    %v332 = vadd.f32 %v283, %v330
    %v333 = vlaneseq
    %v334 = vshrl.u32 %v333, 7
    %v335 = vsub.s32 3, %v334
    %v336 = vrot.slane %v181, %v335
    %338 = vrot.lane.b32.xlu0 %v336, 64
    %v339 = vpop.permute.xlu0 %338
    %v341 = vadd.f32 %v173, %v339
    %v342 = vxor.u32 %v341, 2147483648
    %v343 = vmul.f32 %v342, 1.442695
    %v344 = vpow.pop %v343
    %v345 = vadd.f32 %v344, 1.0
    %v346 = vrcp.pop %v345
    %v347 = vmul.f32 1.0, %v346
    %v348 = vlaneseq
    %v349 = vshrl.u32 %v348, 7
    %v350 = vsub.s32 3, %v349
    %v351 = vrot.slane %v182, %v350
    %353 = vrot.lane.b32.xlu0 %v351, 64
    %v354 = vpop.permute.xlu0 %353
    %v356 = vmul.f32 %v347, %v354
    %v357 = vmul.f32 %v347, %v209
    %v358 = vrot.slane %v313, 6
    %v360 = vmul.f32 %v356, %v358
    %v361 = vmul.f32 %v357, %v214
    %v362 = vadd.f32 %v360, %v361
    %364 = vrot.lane.b32.xlu0 %v362, 96
    %v365 = vpop.permute.xlu0 %364
    %v367 = vmul.f32 %v173, %v365
    %v368 = vmul.f32 %v367, %v225
    %v370 = vrot.slane %v368, 6
    %v372 = vadd.f32 %v323, %v370
    %v373 = vrot.slane %v229, 6
    %v375 = vadd.f32 %v326, %v373
    %v376 = vrot.slane %v30, 6
    %v378 = vadd.f32 %v329, %v376
    %v379 = vrot.slane %v173, 6
    %v381 = vadd.f32 %v332, %v379
    %v382 = vlaneseq
    %v383 = vshrl.u32 %v382, 7
    %v384 = vsub.s32 4, %v383
    %v385 = vrot.slane %v181, %v384
    %387 = vrot.lane.b32.xlu0 %v385, 64
    %v388 = vpop.permute.xlu0 %387
    %v390 = vadd.f32 %v178, %v388
    %v391 = vxor.u32 %v390, 2147483648
    %v392 = vmul.f32 %v391, 1.442695
    %v393 = vpow.pop %v392
    %v394 = vadd.f32 %v393, 1.0
    %v395 = vrcp.pop %v394
    %v396 = vmul.f32 1.0, %v395
    %v397 = vlaneseq
    %v398 = vshrl.u32 %v397, 7
    %v399 = vsub.s32 4, %v398
    %v400 = vrot.slane %v182, %v399
    %402 = vrot.lane.b32.xlu0 %v400, 64
    %v403 = vpop.permute.xlu0 %402
    %v405 = vmul.f32 %v396, %v403
    %407 = vrot.lane.b32.xlu0 %v178, 64
    %v408 = vpop.permute.xlu0 %407
    %v410 = vmul.f32 %v396, %v408
    %v411 = vrot.slane %v362, 6
    %v413 = vmul.f32 %v405, %v411
    %414 = vrot.lane.b32.xlu0 %v76, 64
    %v415 = vpop.permute.xlu0 %414
    %v417 = vmul.f32 %v410, %v415
    %v418 = vadd.f32 %v413, %v417
    %420 = vrot.lane.b32.xlu0 %v418, 96
    %v421 = vpop.permute.xlu0 %420
    %v423 = vmul.f32 %v178, %v421
    %425 = vrot.lane.b32.xlu0 %v88, 32
    %v426 = vpop.permute.xlu0 %425
    %v428 = vmul.f32 %v423, %v426
    %v429 = vadd.f32 %v372, %v428
    %v430 = vmul.f32 %v76, %v88
    %v431 = vadd.f32 %v375, %v430
    %v432 = vadd.f32 %v378, %v31
    %v433 = vadd.f32 %v381, %v178
    %v434 = vlaneseq
    %v435 = vshrl.u32 %v434, 7
    %v436 = vsub.s32 5, %v435
    %v437 = vrot.slane %v181, %v436
    %439 = vrot.lane.b32.xlu0 %v437, 64
    %v440 = vpop.permute.xlu0 %439
    %v442 = vadd.f32 %v178, %v440
    %v443 = vxor.u32 %v442, 2147483648
    %v444 = vmul.f32 %v443, 1.442695
    %v445 = vpow.pop %v444
    %v446 = vadd.f32 %v445, 1.0
    %v447 = vrcp.pop %v446
    %v448 = vmul.f32 1.0, %v447
    %v449 = vlaneseq
    %v450 = vshrl.u32 %v449, 7
    %v451 = vsub.s32 5, %v450
    %v452 = vrot.slane %v182, %v451
    %454 = vrot.lane.b32.xlu0 %v452, 64
    %v455 = vpop.permute.xlu0 %454
    %v457 = vmul.f32 %v448, %v455
    %v458 = vmul.f32 %v448, %v408
    %v459 = vrot.slane %v418, 6
    %v461 = vmul.f32 %v457, %v459
    %v462 = vmul.f32 %v458, %v415
    %v463 = vadd.f32 %v461, %v462
    %465 = vrot.lane.b32.xlu0 %v463, 96
    %v466 = vpop.permute.xlu0 %465
    %v468 = vmul.f32 %v178, %v466
    %v469 = vmul.f32 %v468, %v426
    %v471 = vrot.slane %v469, 2
    %v473 = vadd.f32 %v429, %v471
    %v475 = vrot.slane %v430, 2
    %v477 = vadd.f32 %v431, %v475
    %v479 = vrot.slane %v31, 2
    %v481 = vadd.f32 %v432, %v479
    %v482 = vrot.slane %v178, 2
    %v484 = vadd.f32 %v433, %v482
    %v485 = vlaneseq
    %v486 = vshrl.u32 %v485, 7
    %v487 = vsub.s32 6, %v486
    %v488 = vrot.slane %v181, %v487
    %490 = vrot.lane.b32.xlu0 %v488, 64
    %v491 = vpop.permute.xlu0 %490
    %v493 = vadd.f32 %v178, %v491
    %v494 = vxor.u32 %v493, 2147483648
    %v495 = vmul.f32 %v494, 1.442695
    %v496 = vpow.pop %v495
    %v497 = vadd.f32 %v496, 1.0
    %v498 = vrcp.pop %v497
    %v499 = vmul.f32 1.0, %v498
    %v500 = vlaneseq
    %v501 = vshrl.u32 %v500, 7
    %v502 = vsub.s32 6, %v501
    %v503 = vrot.slane %v182, %v502
    %505 = vrot.lane.b32.xlu0 %v503, 64
    %v506 = vpop.permute.xlu0 %505
    %v508 = vmul.f32 %v499, %v506
    %v509 = vmul.f32 %v499, %v408
    %v510 = vrot.slane %v463, 6
    %v512 = vmul.f32 %v508, %v510
    %v513 = vmul.f32 %v509, %v415
    %v514 = vadd.f32 %v512, %v513
    %516 = vrot.lane.b32.xlu0 %v514, 96
    %v517 = vpop.permute.xlu0 %516
    %v519 = vmul.f32 %v178, %v517
    %v520 = vmul.f32 %v519, %v426
    %v522 = vrot.slane %v520, 4
    %v524 = vadd.f32 %v473, %v522
    %v525 = vrot.slane %v430, 4
    %v527 = vadd.f32 %v477, %v525
    %v528 = vrot.slane %v31, 4
    %v530 = vadd.f32 %v481, %v528
    %v531 = vrot.slane %v178, 4
    %v533 = vadd.f32 %v484, %v531
    %v534 = vlaneseq
    %v535 = vshrl.u32 %v534, 7
    %v536 = vsub.s32 7, %v535
    %v537 = vrot.slane %v181, %v536
    %539 = vrot.lane.b32.xlu0 %v537, 64
    %v540 = vpop.permute.xlu0 %539
    %v542 = vadd.f32 %v178, %v540
    %v543 = vxor.u32 %v542, 2147483648
    %v544 = vmul.f32 %v543, 1.442695
    %v545 = vpow.pop %v544
    %v546 = vadd.f32 %v545, 1.0
    %v547 = vrcp.pop %v546
    %v548 = vmul.f32 1.0, %v547
    %v549 = vlaneseq
    %v550 = vshrl.u32 %v549, 7
    %v551 = vsub.s32 7, %v550
    %v552 = vrot.slane %v182, %v551
    %554 = vrot.lane.b32.xlu0 %v552, 64
    %v555 = vpop.permute.xlu0 %554
    %v557 = vmul.f32 %v548, %v555
    %v558 = vmul.f32 %v548, %v408
    %v559 = vrot.slane %v514, 6
    %v561 = vmul.f32 %v557, %v559
    %v562 = vmul.f32 %v558, %v415
    %v563 = vadd.f32 %v561, %v562
    %565 = vrot.lane.b32.xlu0 %v563, 96
    %v566 = vpop.permute.xlu0 %565
    %v568 = vmul.f32 %v178, %v566
    %v569 = vmul.f32 %v568, %v426
    %v571 = vrot.slane %v569, 6
    %v573 = vadd.f32 %v524, %v571
    %v574 = vrot.slane %v430, 6
    %v576 = vadd.f32 %v527, %v574
    %v577 = vrot.slane %v31, 6
    %v579 = vadd.f32 %v530, %v577
    %v580 = vrot.slane %v178, 6
    %v582 = vadd.f32 %v533, %v580
    %v583 = vmul.f32 %v582, 0.125
    %v584 = vmax.f32 %v583, 0.0
    %v585 = vxor.u32 %v584, 2147483648
    %v586 = vmul.f32 %v585, 1.442695
    %v587 = vpow.pop %v586
    %v588 = vadd.f32 %v587, 1.0
    %v589 = vrcp.pop %v588
    %v590 = vmul.f32 1.0, %v589
    %v591 = vlaneseq
    %v592 = vshrl.u32 %v591, 7
    %v593 = vsub.s32 2, %v592
    %v594 = vrot.slane %v32, %v593
    %596 = vrot.lane.b32.xlu0 %v594, 96
    %v597 = vpop.permute.xlu0 %596
    %v599 = vadd.f32 %v590, %v597
    %601 = vrot.lane.b32.xlu0 %v573, 96
    %v602 = vpop.permute.xlu0 %601
    %v604 = vadd.f32 %v579, %v602
    %606 = vrot.lane.b32.xlu0 %v576, 96
    %v607 = vpop.permute.xlu0 %606
    %v609 = vmul.f32 %v599, %v607
    %611 = vrot.lane.b32.xlu0 %v609, 32
    %v612 = vpop.permute.xlu0 %611
    %v614 = vadd.f32 %v604, %v612
    %v615 = vmul.f32 %v614, 0.125
    %vm616 = vcmask 254976
    %v617 = vsel %vm616, %v615, 0.0
    %618 = vadd.xlane.f32.xlu0 %v617
    %v619 = vpop.xlane.xlu0 %618
    %v620 = vmul.f32 %v619, %v40
    %v621 = vmul.f32 %v615, %v615
    %v622 = vsel %vm616, %v621, 0.0
    %623 = vadd.xlane.f32.xlu0 %v622
    %v624 = vpop.xlane.xlu0 %623
    %v625 = vmul.f32 %v624, %v40
    %v626 = vmul.f32 %v620, %v620
    %v627 = vsub.f32 %v625, %v626
    %v628 = vsub.f32 %v615, %v620
    %v629 = vadd.f32 %v627, 1e-05
    %v630 = vrsqrt.pop %v629
    %v631 = vmul.f32 %v628, %v630
    %v632 = vlaneseq
    %v633 = vshrl.u32 %v632, 7
    %v634 = vsub.s32 3, %v633
    %v635 = vrot.slane %v32, %v634
    %v636 = vmul.f32 %v631, %v635
    %v637 = vlaneseq
    %v638 = vshrl.u32 %v637, 7
    %v639 = vsub.s32 4, %v638
    %v640 = vrot.slane %v32, %v639
    %v641 = vadd.f32 %v636, %v640
    %v642 = vld [vmem:[%s5] sm:$0xff]
    %v643 = vld [vmem:[%s5 + $0x8] sm:$0xff]
    %v644 = vld [vmem:[%s5 + $0x10] sm:$0xff]
    %v645 = vld [vmem:[%s5 + $0x18] sm:$0xff]
    %v646 = vld [vmem:[%s6] sm:$0x1]
    %v648 = vlaneseq
    %v649 = vshrl.u32 %v648, 7
    %v650 = vsub.s32 0, %v649
    %v651 = vrot.slane %v646, %v650
    %v654 = vsel %vm33, %v641, 0
    %656 = vmatprep.subr.mxu0 0.0
    %657 = vmatpush1.msra.mxu0 %v642
    %658 = vmatprep.subr.mxu0 0.0
    %659 = vmatpush1.msra.mxu0 %v643
    %660 = vmatprep.subr.mxu0 0.0
    %661 = vmatpush1.msra.mxu0 %v644
    %662 = vmatprep.subr.mxu0 0.0
    %663 = vmatpush1.msra.mxu0 %v645
    %664 = vmatprep.subr.mxu0 0.0
    %665 = vmatpush1.msra.mxu0 0.0
    %666 = vmatprep.subr.mxu0 0.0
    %667 = vmatpush1.msra.mxu0 0.0
    %668 = vmatprep.subr.mxu0 0.0
    %669 = vmatpush1.msra.mxu0 0.0
    %670 = vmatprep.subr.mxu0 0.0
    %671 = vmatpush1.msra.mxu0 0.0
    %672 = vmatprep.subr.mxu0 0.0
    %673 = vmatpush1.msra.mxu0 0.0
    %674 = vmatprep.subr.mxu0 0.0
    %675 = vmatpush1.msra.mxu0 0.0
    %676 = vmatprep.subr.mxu0 0.0
    %677 = vmatpush1.msra.mxu0 0.0
    %678 = vmatprep.subr.mxu0 0.0
    %679 = vmatpush1.msra.mxu0 0.0
    %680 = vmatprep.subr.mxu0 0.0
    %681 = vmatpush1.msra.mxu0 0.0
    %682 = vmatprep.subr.mxu0 0.0
    %683 = vmatpush1.msra.mxu0 0.0
    %684 = vmatprep.subr.mxu0 0.0
    %685 = vmatpush1.msra.mxu0 0.0
    %686 = vmatprep.subr.mxu0 0.0
    %687 = vmatpush1.msra.mxu0 0.0
    %688 = vmatprep.subr.mxu0 0.0
    %689 = vmatpush1.msra.mxu0 0.0
    %690 = vmatprep.subr.mxu0 0.0
    %691 = vmatpush1.msra.mxu0 0.0
    %692 = vmatprep.subr.mxu0 0.0
    %693 = vmatpush1.msra.mxu0 0.0
    %694 = vmatprep.subr.mxu0 0.0
    %695 = vmatpush1.msra.mxu0 0.0
    %696 = vmatprep.subr.mxu0 0.0
    %697 = vmatpush1.msra.mxu0 0.0
    %698 = vmatprep.subr.mxu0 0.0
    %699 = vmatpush1.msra.mxu0 0.0
    %700 = vmatprep.subr.mxu0 0.0
    %701 = vmatpush1.msra.mxu0 0.0
    %702 = vmatprep.subr.mxu0 0.0
    %703 = vmatpush1.msra.mxu0 0.0
    %704 = vmatprep.subr.mxu0 0.0
    %705 = vmatpush1.msra.mxu0 0.0
    %706 = vmatprep.subr.mxu0 0.0
    %707 = vmatpush1.msra.mxu0 0.0
    %708 = vmatprep.subr.mxu0 0.0
    %709 = vmatpush1.msra.mxu0 0.0
    %710 = vmatprep.subr.mxu0 0.0
    %711 = vmatpush1.msra.mxu0 0.0
    %712 = vmatprep.subr.mxu0 0.0
    %713 = vmatpush1.msra.mxu0 0.0
    %714 = vmatprep.subr.mxu0 0.0
    %715 = vmatpush1.msra.mxu0 0.0
    %716 = vmatprep.subr.mxu0 0.0
    %717 = vmatpush1.msra.mxu0 0.0
    %718 = vmatprep.subr.mxu0 0.0
    %719 = vmatpush1.msra.mxu0 0.0
    %720 = vmatprep.mubr.f32.mxu0 0.0
    %721 = vmatmul.mubr.f32.gmra.mrb[0].mxu0 %v654
    %v722 = vpop.f32.mrb[0].mxu0
    %v723 = vadd.f32 %v651, %v722
    %v724 = vpop.f32.mrb[0].mxu0
    %725 = vdwg.mxu0
    %v726 = vmul.f32 %v723, 0.5
    %v727 = vmul.f32 %v723, 0.044715
    %v728 = vmul.f32 %v727, %v723
    %v729 = vmul.f32 %v728, %v723
    %v730 = vadd.f32 %v723, %v729
    %v731 = vmul.f32 %v730, 0.7978846
    %v732 = vtanh.pop %v731
    %v733 = vadd.f32 %v732, 1.0
    %v734 = vmul.f32 %v726, %v733
    %v735 = vld [vmem:[%s7] sm:$0xff]
    %v736 = vld [vmem:[%s7 + $0x8] sm:$0xff]
    %v737 = vld [vmem:[%s7 + $0x10] sm:$0xff]
    %v738 = vld [vmem:[%s7 + $0x18] sm:$0xff]
    %v739 = vld [vmem:[%s7 + $0x20] sm:$0xff]
    %v740 = vld [vmem:[%s7 + $0x28] sm:$0xff]
    %v741 = vld [vmem:[%s7 + $0x30] sm:$0xff]
    %v742 = vld [vmem:[%s7 + $0x38] sm:$0xff]
    %v743 = vlaneseq
    %v744 = vshrl.u32 %v743, 7
    %v745 = vsub.s32 5, %v744
    %v746 = vrot.slane %v32, %v745
    %vm747 = vcmask 523264
    %v749 = vsel %vm747, %v734, 0
    %751 = vmatprep.subr.mxu0 0.0
    %752 = vmatpush1.msra.mxu0 %v735
    %753 = vmatprep.subr.mxu0 0.0
    %754 = vmatpush1.msra.mxu0 %v736
    %755 = vmatprep.subr.mxu0 0.0
    %756 = vmatpush1.msra.mxu0 %v737
    %757 = vmatprep.subr.mxu0 0.0
    %758 = vmatpush1.msra.mxu0 %v738
    %759 = vmatprep.subr.mxu0 0.0
    %760 = vmatpush1.msra.mxu0 %v739
    %761 = vmatprep.subr.mxu0 0.0
    %762 = vmatpush1.msra.mxu0 %v740
    %763 = vmatprep.subr.mxu0 0.0
    %764 = vmatpush1.msra.mxu0 %v741
    %765 = vmatprep.subr.mxu0 0.0
    %766 = vmatpush1.msra.mxu0 %v742
    %767 = vmatprep.subr.mxu0 0.0
    %768 = vmatpush1.msra.mxu0 0.0
    %769 = vmatprep.subr.mxu0 0.0
    %770 = vmatpush1.msra.mxu0 0.0
    %771 = vmatprep.subr.mxu0 0.0
    %772 = vmatpush1.msra.mxu0 0.0
    %773 = vmatprep.subr.mxu0 0.0
    %774 = vmatpush1.msra.mxu0 0.0
    %775 = vmatprep.subr.mxu0 0.0
    %776 = vmatpush1.msra.mxu0 0.0
    %777 = vmatprep.subr.mxu0 0.0
    %778 = vmatpush1.msra.mxu0 0.0
    %779 = vmatprep.subr.mxu0 0.0
    %780 = vmatpush1.msra.mxu0 0.0
    %781 = vmatprep.subr.mxu0 0.0
    %782 = vmatpush1.msra.mxu0 0.0
    %783 = vmatprep.subr.mxu0 0.0
    %784 = vmatpush1.msra.mxu0 0.0
    %785 = vmatprep.subr.mxu0 0.0
    %786 = vmatpush1.msra.mxu0 0.0
    %787 = vmatprep.subr.mxu0 0.0
    %788 = vmatpush1.msra.mxu0 0.0
    %789 = vmatprep.subr.mxu0 0.0
    %790 = vmatpush1.msra.mxu0 0.0
    %791 = vmatprep.subr.mxu0 0.0
    %792 = vmatpush1.msra.mxu0 0.0
    %793 = vmatprep.subr.mxu0 0.0
    %794 = vmatpush1.msra.mxu0 0.0
    %795 = vmatprep.subr.mxu0 0.0
    %796 = vmatpush1.msra.mxu0 0.0
    %797 = vmatprep.subr.mxu0 0.0
    %798 = vmatpush1.msra.mxu0 0.0
    %799 = vmatprep.subr.mxu0 0.0
    %800 = vmatpush1.msra.mxu0 0.0
    %801 = vmatprep.subr.mxu0 0.0
    %802 = vmatpush1.msra.mxu0 0.0
    %803 = vmatprep.subr.mxu0 0.0
    %804 = vmatpush1.msra.mxu0 0.0
    %805 = vmatprep.subr.mxu0 0.0
    %806 = vmatpush1.msra.mxu0 0.0
    %807 = vmatprep.subr.mxu0 0.0
    %808 = vmatpush1.msra.mxu0 0.0
    %809 = vmatprep.subr.mxu0 0.0
    %810 = vmatpush1.msra.mxu0 0.0
    %811 = vmatprep.subr.mxu0 0.0
    %812 = vmatpush1.msra.mxu0 0.0
    %813 = vmatprep.subr.mxu0 0.0
    %814 = vmatpush1.msra.mxu0 0.0
    %815 = vmatprep.mubr.f32.mxu0 0.0
    %816 = vmatmul.mubr.f32.gmra.mrb[0].mxu0 %v749
    %v817 = vpop.f32.mrb[0].mxu0
    %v818 = vadd.f32 %v746, %v817
    %v819 = vpop.f32.mrb[0].mxu0
    %820 = vdwg.mxu0
    %v821 = vadd.f32 %v818, %v615
    %822 = vst.msk [vmem:[#allocation2] sm:$0x3] %vm616, %v821
    // Predicated region
    $region34: #{tpu_custom_call.1} parent=1 // pred_check
      _
    $region35: #{tpu_custom_call.1} parent=1 // pred_check_branch
      %824 = sbr.rel (0) target = $region37
    $region36: #{tpu_custom_call.1} parent=1 // pred_region
      %s826 = ssub.s32 32, 32
      %827 = vsyncadd [#allocation3], %s826
      %s829 = sshll.u32 [#allocation2], 4
      %s830 = int_to_ptr.vmem [resolvable:$true] %s829
      %832 = dma.vmem_to_hbm [thread:$0]  %s830, 32, %s8, [#allocation3]
    $region37: #{tpu_custom_call.1} parent=1 // pred_fallthru
      _
    // Predicated region
    $region38: #{tpu_custom_call.1} parent=1 // pred_check
      _
    $region39: #{tpu_custom_call.1} parent=1 // pred_check_branch
      %834 = sbr.rel (0) target = $region41
    $region40: #{tpu_custom_call.1} parent=1 // pred_region
      %835 = dma.done [#allocation3], 32
    $region41: #{tpu_custom_call.1} parent=1 // pred_fallthru
      _
    %836 = vsyncpa [#allocation3], 1

</llo_original>
